<compile_context>
chip_gen: v7x
topology: tpu7x:2x2x1
jax: 0.10.0
libtpu: 0.0.40
codegen_flags: <defaults>
</compile_context>

<pallas_src>
import functools

import jax
import jax.numpy as jnp
from jax.experimental import pallas as pl
from jax.experimental.pallas import tpu as pltpu


def _lowbias32(x):
    """Stateless 32-bit integer hash (lowbias32).  Plain VPU integer ops only,
    so it lowers both on the Mosaic TPU backend and in interpret mode."""
    x = x ^ (x >> jnp.uint32(16))
    x = x * jnp.uint32(0x7FEB352D)
    x = x ^ (x >> jnp.uint32(15))
    x = x * jnp.uint32(0x846CA68B)
    x = x ^ (x >> jnp.uint32(16))
    return x


def _embedding_dropout_kernel(seed_ref, ids_ref, bdtab_ref, out_ref, *,
                              dropout_p, tile, pack, vocab, dim):
    # ids_ref:   (1, tile//pack, pack) int32  VMEM
    # bdtab_ref: (pack*V, pack*D)      f32    VMEM (block-diagonal table)
    # out_ref:   (tile//pack, pack*D)  f32    VMEM (lane-dense packed output)
    R = tile // pack           # packed rows per grid step
    W = pack * dim             # output lane width (128 when dim divides 128)

    ids2 = ids_ref[0]          # (R, pack) int32

    # Gather-as-matmul, directly in the lane-packed layout:
    #   onehot[r, p*vocab + v] = (ids2[r, p] == v)
    # built from `pack` broadcast-compares (no gather / reshape / concat).
    # Multiplying by the block-diagonal table yields
    #   out[r, p*dim + d] = table[ids2[r, p], d]
    # i.e. `pack` consecutive token embeddings per 128-lane row.
    col = jax.lax.broadcasted_iota(jnp.int32, (R, pack * vocab), 1)
    oh = jnp.zeros((R, pack * vocab), dtype=bdtab_ref.dtype)
    for p in range(pack):      # pack <= 4 here; static unroll
        oh = oh + (col == (ids2[:, p:p + 1] + p * vocab)).astype(bdtab_ref.dtype)
    # Note: for production, cast oh (exact 0/1) and the table to bf16 for the
    # MXU; kept f32 here so the numerics match the f32 reference bit-exactly.
    emb = jnp.dot(oh, bdtab_ref[...], preferred_element_type=jnp.float32)  # (R, W)

    # Dropout (training semantics: zero w.p. p, scale survivors by 1/(1-p)).
    # p is a static hyperparameter -> Python-level branch.
    if dropout_p > 0.0:
        # Stateless counter-based mask: hash(seed, global element index) and
        # compare against an integer threshold (no float-uniform construction).
        lin = (jax.lax.broadcasted_iota(jnp.int32, (R, W), 0) * W
               + jax.lax.broadcasted_iota(jnp.int32, (R, W), 1))
        base = (seed_ref[0].astype(jnp.uint32) * jnp.uint32(0x9E3779B9)
                + (pl.program_id(0) * (tile * dim)).astype(jnp.uint32))
        bits = _lowbias32(base + lin.astype(jnp.uint32))
        thr = jnp.uint32(min(int(dropout_p * 4294967296.0), 4294967295))
        scale = jnp.float32(1.0 / (1.0 - dropout_p))
        emb = emb * jnp.where(bits >= thr, scale, jnp.float32(0.0))

    out_ref[...] = emb.astype(out_ref.dtype)


def transformer_embedding(ids, table, *, dropout_p=0.0, seed=0, token_tile=512):
    """ids: (B, S) int32 token ids.  table: (V, D) embedding matrix."""
    B, S = ids.shape
    V, D = table.shape
    N = B * S

    # Pack `pack` tokens per 128-lane output row so every store is lane-dense.
    pack = 128 // D if (D < 128 and 128 % D == 0) else 1
    assert N % pack == 0, "token count must be a multiple of the packing factor"

    # Large token tiles amortise the ~0.35us/step pipeline overhead.  Fall back
    # to a single grid step for small or oddly sized inputs.
    if (N % token_tile == 0 and token_tile % pack == 0
            and (token_tile // pack) % 8 == 0):
        tile = token_tile
    else:
        tile = N
    num_tiles = N // tile

    ids_r = ids.astype(jnp.int32).reshape(num_tiles, tile // pack, pack)
    # Block-diagonal table: `pack` copies of `table` on the diagonal, so the
    # one-hot matmul produces the packed (lane-dense) layout directly.
    # TODO(synk): for production vocab sizes, tile V as an inner reduction grid
    # axis with an f32 accumulator instead of keeping the full table resident
    # in VMEM (v7x only has 64 MiB physical VMEM).
    bd_table = table if pack == 1 else jnp.kron(jnp.eye(pack, dtype=table.dtype),
                                                table)
    seed_arr = jnp.array([seed], dtype=jnp.int32)

    kernel = functools.partial(_embedding_dropout_kernel,
                               dropout_p=float(dropout_p), tile=tile,
                               pack=pack, vocab=V, dim=D)

    out_packed = pl.pallas_call(
        kernel,
        out_shape=jax.ShapeDtypeStruct((N // pack, pack * D), table.dtype),
        grid_spec=pltpu.PrefetchScalarGridSpec(
            num_scalar_prefetch=1,                      # seed -> SMEM
            grid=(num_tiles,),
            in_specs=[
                pl.BlockSpec((1, tile // pack, pack), lambda i, s: (i, 0, 0)),
                pl.BlockSpec((pack * V, pack * D),    lambda i, s: (0, 0)),
            ],
            out_specs=pl.BlockSpec((tile // pack, pack * D),
                                   lambda i, s: (i, 0)),
        ),
        compiler_params=pltpu.CompilerParams(
            # Each grid step is independent (stateless per-element hash), so
            # the grid may shard across both TensorCores on v7x.
            dimension_semantics=("parallel",)),
    )(seed_arr, ids_r, bd_table)

    # (N//pack, pack*D) row-major == (N, D) row-major == (B, S, D).
    return out_packed.reshape(B, S, D)


if __name__ == "__main__":
    # Module hyperparameters implied by __init__:
    #   num_embeddings = len(amino_acid_to_id) + 4, padding_idx, embedding_dim
    NUM_AMINO_ACIDS = 20
    VOCAB = NUM_AMINO_ACIDS + 4          # 24
    EMBED_DIM = 32
    PADDING_IDX = 21
    DROPOUT_P = 0.1
    B, S = 2, 8

    key = jax.random.PRNGKey(0)
    k_tab, k_ids, k_ids2 = jax.random.split(key, 3)

    # Deterministic parameter init (nn.Embedding ~ N(0,1), padding row zeroed).
    table = jax.random.normal(k_tab, (VOCAB, EMBED_DIM), dtype=jnp.float32)
    table = table.at[PADDING_IDX].set(0.0)

    ids = jax.random.randint(k_ids, (B, S), 0, VOCAB, dtype=jnp.int32)
    ids = ids.at[0, -1].set(PADDING_IDX)   # make sure a padding token appears

    # 1) dropout disabled (eval-mode semantics) -> exact check vs. pure gather
    out_eval = jax.block_until_ready(
        transformer_embedding(ids, table, dropout_p=0.0))
    ref = table[ids]
    assert out_eval.shape == (B, S, EMBED_DIM)
    assert jnp.allclose(out_eval, ref, atol=1e-6), "embedding mismatch"

    # 2) dropout enabled (training-mode semantics, in-kernel stateless hash)
    out_train = jax.block_until_ready(
        transformer_embedding(ids, table, dropout_p=DROPOUT_P, seed=42))
    assert out_train.shape == (B, S, EMBED_DIM)
    # surviving elements are the eval output scaled by 1/(1-p); dropped are 0
    scaled = ref / (1.0 - DROPOUT_P)
    ok = jnp.logical_or(jnp.isclose(out_train, 0.0, atol=1e-6),
                        jnp.isclose(out_train, scaled, atol=1e-4))
    assert bool(jnp.all(ok)), "dropout output inconsistent"

    # 3) larger input exercising the tiled path (default token_tile=512, grid=4)
    B2, S2 = 4, 512
    ids_big = jax.random.randint(k_ids2, (B2, S2), 0, VOCAB, dtype=jnp.int32)
    out_big = jax.block_until_ready(
        transformer_embedding(ids_big, table, dropout_p=0.0))
    assert jnp.allclose(out_big, table[ids_big], atol=1e-6), "tiled mismatch"

    print("KERNEL_OK")
</pallas_src>

<mosaic_0001>
module attributes {stable_mosaic.version = 11 : i64} {
  func.func @_embedding_dropout_kernel(%arg0: i32, %arg1: memref<1xi32, #tpu.memory_space<smem>>, %arg2: memref<1x4x4xi32, #tpu.memory_space<vmem>>, %arg3: memref<96x128xf32, #tpu.memory_space<vmem>>, %arg4: memref<4x128xf32, #tpu.memory_space<vmem>>) attributes {dimension_semantics = [#tpu.dimension_semantics<parallel>], iteration_bounds = array<i64: 1>, scalar_prefetch = 1 : i64, scratch_operands = 0 : i64, tpu.core_type = #tpu.core_type<tc>, window_params = [{transform_indices = @transform_0, window_bounds = array<i64: 1, 4, 4>}, {pipeline_mode = #tpu.pipeline_mode<synchronous>, transform_indices = @transform_1, window_bounds = array<i64: 96, 128>}, {transform_indices = @transform_2, window_bounds = array<i64: 4, 128>}]} {
    %c0 = arith.constant 0 : index
    %c0_0 = arith.constant 0 : index
    %c0_1 = arith.constant 0 : index
    %0 = vector.load %arg2[%c0, %c0_0, %c0_1] : memref<1x4x4xi32, #tpu.memory_space<vmem>>, vector<1x4x4xi32>
    %1 = vector.shape_cast %0 : vector<1x4x4xi32> to vector<4x4xi32>
    %2 = tpu.iota {dimensions = array<i32: 1>} : vector<4x96xi32>
    %cst = arith.constant 0.000000e+00 : f32
    %3 = vector.broadcast %cst : f32 to vector<4x96xf32>
    %4 = vector.extract_strided_slice %1 {offsets = [0, 0], sizes = [4, 1], strides = [1, 1]} : vector<4x4xi32> to vector<4x1xi32>
    %c0_i32 = arith.constant 0 : i32
    %5 = vector.broadcast %c0_i32 : i32 to vector<4x1xi32>
    %6 = arith.addi %4, %5 : vector<4x1xi32>
    %7 = vector.broadcast %6 : vector<4x1xi32> to vector<4x96xi32>
    %8 = arith.cmpi eq, %2, %7 : vector<4x96xi32>
    %9 = arith.extui %8 : vector<4x96xi1> to vector<4x96xi32>
    %10 = arith.sitofp %9 : vector<4x96xi32> to vector<4x96xf32>
    %11 = arith.addf %3, %10 : vector<4x96xf32>
    %12 = vector.extract_strided_slice %1 {offsets = [0, 1], sizes = [4, 1], strides = [1, 1]} : vector<4x4xi32> to vector<4x1xi32>
    %c24_i32 = arith.constant 24 : i32
    %13 = vector.broadcast %c24_i32 : i32 to vector<4x1xi32>
    %14 = arith.addi %12, %13 : vector<4x1xi32>
    %15 = vector.broadcast %14 : vector<4x1xi32> to vector<4x96xi32>
    %16 = arith.cmpi eq, %2, %15 : vector<4x96xi32>
    %17 = arith.extui %16 : vector<4x96xi1> to vector<4x96xi32>
    %18 = arith.sitofp %17 : vector<4x96xi32> to vector<4x96xf32>
    %19 = arith.addf %11, %18 : vector<4x96xf32>
    %20 = vector.extract_strided_slice %1 {offsets = [0, 2], sizes = [4, 1], strides = [1, 1]} : vector<4x4xi32> to vector<4x1xi32>
    %c48_i32 = arith.constant 48 : i32
    %21 = vector.broadcast %c48_i32 : i32 to vector<4x1xi32>
    %22 = arith.addi %20, %21 : vector<4x1xi32>
    %23 = vector.broadcast %22 : vector<4x1xi32> to vector<4x96xi32>
    %24 = arith.cmpi eq, %2, %23 : vector<4x96xi32>
    %25 = arith.extui %24 : vector<4x96xi1> to vector<4x96xi32>
    %26 = arith.sitofp %25 : vector<4x96xi32> to vector<4x96xf32>
    %27 = arith.addf %19, %26 : vector<4x96xf32>
    %28 = vector.extract_strided_slice %1 {offsets = [0, 3], sizes = [4, 1], strides = [1, 1]} : vector<4x4xi32> to vector<4x1xi32>
    %c72_i32 = arith.constant 72 : i32
    %29 = vector.broadcast %c72_i32 : i32 to vector<4x1xi32>
    %30 = arith.addi %28, %29 : vector<4x1xi32>
    %31 = vector.broadcast %30 : vector<4x1xi32> to vector<4x96xi32>
    %32 = arith.cmpi eq, %2, %31 : vector<4x96xi32>
    %33 = arith.extui %32 : vector<4x96xi1> to vector<4x96xi32>
    %34 = arith.sitofp %33 : vector<4x96xi32> to vector<4x96xf32>
    %35 = arith.addf %27, %34 : vector<4x96xf32>
    %c0_2 = arith.constant 0 : index
    %c0_3 = arith.constant 0 : index
    %36 = vector.load %arg3[%c0_2, %c0_3] : memref<96x128xf32, #tpu.memory_space<vmem>>, vector<96x128xf32>
    %cst_4 = arith.constant dense<0.000000e+00> : vector<4x128xf32>
    %37 = tpu.matmul %35, %36, %cst_4 {dimension_numbers = #tpu.dot_dimension_numbers<[1], [0], [0], [1], [0, 0, 1, 1], [], []>} : vector<4x96xf32>, vector<96x128xf32>, vector<4x128xf32> -> vector<4x128xf32>
    %c0_5 = arith.constant 0 : index
    %c0_6 = arith.constant 0 : index
    %38 = vector.load %arg4[%c0_5, %c0_6] : memref<4x128xf32, #tpu.memory_space<vmem>>, vector<4x128xf32>
    tpu.vector_store %arg4[%c0_5, %c0_6], %37 {strides = array<i32>} : memref<4x128xf32, #tpu.memory_space<vmem>>, vector<4x128xf32>,
    return
  }
  func.func @transform_0(%arg0: i32, %arg1: memref<1xi32, #tpu.memory_space<smem>>) -> (i32, i32, i32) {
    %c0_i32 = arith.constant 0 : i32
    %c0_i32_0 = arith.constant 0 : i32
    %c0_i32_1 = arith.constant 0 : i32
    return %arg0, %c0_i32, %c0_i32_0 : i32, i32, i32
  }
  func.func @transform_1(%arg0: i32, %arg1: memref<1xi32, #tpu.memory_space<smem>>) -> (i32, i32) {
    %c0_i32 = arith.constant 0 : i32
    %c0_i32_0 = arith.constant 0 : i32
    %c0_i32_1 = arith.constant 0 : i32
    return %c0_i32, %c0_i32_0 : i32, i32
  }
  func.func @transform_2(%arg0: i32, %arg1: memref<1xi32, #tpu.memory_space<smem>>) -> (i32, i32) {
    %c0_i32 = arith.constant 0 : i32
    %c0_i32_0 = arith.constant 0 : i32
    return %arg0, %c0_i32 : i32, i32
  }
}

</mosaic_0001>

<llo_original>
// kernel: tpu_custom_call.1
$region0: #{tpu_custom_call.1}
  #allocation0 [shape = 'u32[]', space=smem, size = 0x4, offset = 0x4, fixed_abs, tag = 'smem constant byte address 0x4 - core index']
  #allocation1 [shape = 'u32[144,128]{1,0:T(1,128)}', space=vmem, size = 0x12000, scoped, tag = 'internal scratch']
  #allocation2 [shape = 's32[1]{0}', space=sflag, size = 0x4, scoped, tag = 'scoped memory for tpu_custom_call.1']
  #allocation3 [shape = 's32[1]{0:T(128)S(6)}', space=smem, size = 0x200, scoped, tag = 'prefetched SMEM operand 0']
  %s0 = inlined_call_operand.<no memory space> [shape: s32[1], index: 0, kind: input, shape index: {}]
  %s1 = inlined_call_operand.hbm [shape: s32[1,4,4], index: 1, kind: input, shape index: {}]
  %s2 = inlined_call_operand.hbm [shape: f32[96,128], index: 2, kind: input, shape index: {}]
  %s3 = inlined_call_operand.hbm [shape: f32[4,128], index: 3, kind: output, shape index: {}]
  %s4 = sld [smem:[#allocation0]]
  $region26: #{tpu_custom_call.1} parent=0
    _
  %s6 = ssub.s32 1, %s4
  %s7 = scalar_select 0, %s6, %s4
  %8 = sst [smem:[#allocation3]] %s0
  $region1: #{tpu_custom_call.1} parent=0
    #allocation4 [shape = 'u8[2048]{0}', space=vmem, size = 0x800, scoped, tag = 'input window, operand 1, single buffered']
    #allocation5 [shape = 's32[1]{0}', space=sflag, size = 0x4, scoped, tag = 'scoped memory for tpu_custom_call.1']
    #allocation6 [shape = 's32[1]{0}', space=sflag, size = 0x4, scoped, tag = 'scoped memory for tpu_custom_call.1']
    #allocation7 [shape = 'u8[49152]{0}', space=vmem, size = 0xc000, scoped, tag = 'input window, operand 2, single buffered']
    #allocation8 [shape = 's32[1]{0}', space=sflag, size = 0x4, scoped, tag = 'scoped memory for tpu_custom_call.1']
    #allocation9 [shape = 'u8[2048]{0}', space=vmem, size = 0x800, scoped, tag = 'output window, operand 0, single buffered']
    %9 = vsyncpa [#allocation5], 0
    %10 = vsyncpa [#allocation8], 0
    %11 = vsyncpa [#allocation6], 0
    // Predicated region
    $region2: #{tpu_custom_call.1} parent=1 // pred_check
      _
    $region3: #{tpu_custom_call.1} parent=1 // pred_check_branch
      %13 = sbr.rel (0) target = $region5
    $region4: #{tpu_custom_call.1} parent=1 // pred_region
      %s15 = ssub.s32 64, 64
      %16 = vsyncadd [#allocation5], %s15
      %s18 = sshll.u32 [#allocation4], 4
      %s19 = int_to_ptr.vmem [resolvable:$true] %s18
      %21 = dma.hbm_to_vmem [thread:$0]  %s1, 64, %s19, [#allocation5]
    $region5: #{tpu_custom_call.1} parent=1 // pred_fallthru
      _
    // Predicated region
    $region6: #{tpu_custom_call.1} parent=1 // pred_check
      _
    $region7: #{tpu_custom_call.1} parent=1 // pred_check_branch
      %23 = sbr.rel (0) target = $region9
    $region8: #{tpu_custom_call.1} parent=1 // pred_region
      %s25 = ssub.s32 1536, 1536
      %26 = vsyncadd [#allocation8], %s25
      %s27 = sshll.u32 [#allocation7], 4
      %s28 = int_to_ptr.vmem [resolvable:$true] %s27
      %33 = dma.hbm_to_vmem [thread:$0]  %s2, 1536, %s28, [#allocation8], 128, 128, 8
    $region9: #{tpu_custom_call.1} parent=1 // pred_fallthru
      _
    // Predicated region
    $region10: #{tpu_custom_call.1} parent=1 // pred_check
      _
    $region11: #{tpu_custom_call.1} parent=1 // pred_check_branch
      %35 = sbr.rel (0) target = $region13
    $region12: #{tpu_custom_call.1} parent=1 // pred_region
      %36 = dma.done [#allocation5], 64
    $region13: #{tpu_custom_call.1} parent=1 // pred_fallthru
      _
    // Predicated region
    $region14: #{tpu_custom_call.1} parent=1 // pred_check
      _
    $region15: #{tpu_custom_call.1} parent=1 // pred_check_branch
      %38 = sbr.rel (0) target = $region17
    $region16: #{tpu_custom_call.1} parent=1 // pred_region
      %39 = dma.done [#allocation8], 1536
    $region17: #{tpu_custom_call.1} parent=1 // pred_fallthru
      _
    %v40 = vld [vmem:[#allocation4] sm:$0xf]
    %v41 = vlaneseq
    %v42 = vand.u32 %v41, 127
    %43 = vset.pattern.permute.xlu0 0
    %44 = vperm.xlu0 %43, %v40
    %v45 = vpop.permute.xlu0 %44
    %vm46 = vcmp.eq.s32.totalorder %v42, %v45
    %v47 = vsel %vm46, 1, 0
    %v48 = vcvt.s32.f32 %v47
    %v49 = vadd.f32 %v48, 0.0
    %v50 = vadd.s32 %v40, 24
    %51 = vset.pattern.permute.xlu0 1
    %52 = vperm.xlu0 %51, %v50
    %v53 = vpop.permute.xlu0 %52
    %vm54 = vcmp.eq.s32.totalorder %v42, %v53
    %v55 = vsel %vm54, 1, 0
    %v56 = vcvt.s32.f32 %v55
    %v57 = vadd.f32 %v49, %v56
    %v58 = vadd.s32 %v40, 48
    %59 = vset.pattern.permute.xlu0 2
    %60 = vperm.xlu0 %59, %v58
    %v61 = vpop.permute.xlu0 %60
    %vm62 = vcmp.eq.s32.totalorder %v42, %v61
    %v63 = vsel %vm62, 1, 0
    %v64 = vcvt.s32.f32 %v63
    %v65 = vadd.f32 %v57, %v64
    %v66 = vadd.s32 %v40, 72
    %67 = vset.pattern.permute.xlu0 3
    %68 = vperm.xlu0 %67, %v66
    %v69 = vpop.permute.xlu0 %68
    %vm70 = vcmp.eq.s32.totalorder %v42, %v69
    %v71 = vsel %vm70, 1, 0
    %v72 = vcvt.s32.f32 %v71
    %v73 = vadd.f32 %v65, %v72
    %v74 = vld [vmem:[#allocation7] sm:$0xff]
    %v75 = vld [vmem:[#allocation7 + $0x8] sm:$0xff]
    %v76 = vld [vmem:[#allocation7 + $0x10] sm:$0xff]
    %v77 = vld [vmem:[#allocation7 + $0x18] sm:$0xff]
    %v78 = vld [vmem:[#allocation7 + $0x20] sm:$0xff]
    %v79 = vld [vmem:[#allocation7 + $0x28] sm:$0xff]
    %v80 = vld [vmem:[#allocation7 + $0x30] sm:$0xff]
    %v81 = vld [vmem:[#allocation7 + $0x38] sm:$0xff]
    %v82 = vld [vmem:[#allocation7 + $0x40] sm:$0xff]
    %v83 = vld [vmem:[#allocation7 + $0x48] sm:$0xff]
    %v84 = vld [vmem:[#allocation7 + $0x50] sm:$0xff]
    %v85 = vld [vmem:[#allocation7 + $0x58] sm:$0xff]
    %vm86 = vcmask 785408
    %v88 = vsel %vm86, %v73, 0
    %90 = vmatprep.subr.mxu0 0.0
    %91 = vmatpush1.msra.mxu0 %v74
    %92 = vmatprep.subr.mxu0 0.0
    %93 = vmatpush1.msra.mxu0 %v75
    %94 = vmatprep.subr.mxu0 0.0
    %95 = vmatpush1.msra.mxu0 %v76
    %96 = vmatprep.subr.mxu0 0.0
    %97 = vmatpush1.msra.mxu0 %v77
    %98 = vmatprep.subr.mxu0 0.0
    %99 = vmatpush1.msra.mxu0 %v78
    %100 = vmatprep.subr.mxu0 0.0
    %101 = vmatpush1.msra.mxu0 %v79
    %102 = vmatprep.subr.mxu0 0.0
    %103 = vmatpush1.msra.mxu0 %v80
    %104 = vmatprep.subr.mxu0 0.0
    %105 = vmatpush1.msra.mxu0 %v81
    %106 = vmatprep.subr.mxu0 0.0
    %107 = vmatpush1.msra.mxu0 %v82
    %108 = vmatprep.subr.mxu0 0.0
    %109 = vmatpush1.msra.mxu0 %v83
    %110 = vmatprep.subr.mxu0 0.0
    %111 = vmatpush1.msra.mxu0 %v84
    %112 = vmatprep.subr.mxu0 0.0
    %113 = vmatpush1.msra.mxu0 %v85
    %114 = vmatprep.subr.mxu0 0.0
    %115 = vmatpush1.msra.mxu0 0.0
    %116 = vmatprep.subr.mxu0 0.0
    %117 = vmatpush1.msra.mxu0 0.0
    %118 = vmatprep.subr.mxu0 0.0
    %119 = vmatpush1.msra.mxu0 0.0
    %120 = vmatprep.subr.mxu0 0.0
    %121 = vmatpush1.msra.mxu0 0.0
    %122 = vmatprep.subr.mxu0 0.0
    %123 = vmatpush1.msra.mxu0 0.0
    %124 = vmatprep.subr.mxu0 0.0
    %125 = vmatpush1.msra.mxu0 0.0
    %126 = vmatprep.subr.mxu0 0.0
    %127 = vmatpush1.msra.mxu0 0.0
    %128 = vmatprep.subr.mxu0 0.0
    %129 = vmatpush1.msra.mxu0 0.0
    %130 = vmatprep.subr.mxu0 0.0
    %131 = vmatpush1.msra.mxu0 0.0
    %132 = vmatprep.subr.mxu0 0.0
    %133 = vmatpush1.msra.mxu0 0.0
    %134 = vmatprep.subr.mxu0 0.0
    %135 = vmatpush1.msra.mxu0 0.0
    %136 = vmatprep.subr.mxu0 0.0
    %137 = vmatpush1.msra.mxu0 0.0
    %138 = vmatprep.subr.mxu0 0.0
    %139 = vmatpush1.msra.mxu0 0.0
    %140 = vmatprep.subr.mxu0 0.0
    %141 = vmatpush1.msra.mxu0 0.0
    %142 = vmatprep.subr.mxu0 0.0
    %143 = vmatpush1.msra.mxu0 0.0
    %144 = vmatprep.subr.mxu0 0.0
    %145 = vmatpush1.msra.mxu0 0.0
    %146 = vmatprep.subr.mxu0 0.0
    %147 = vmatpush1.msra.mxu0 0.0
    %148 = vmatprep.subr.mxu0 0.0
    %149 = vmatpush1.msra.mxu0 0.0
    %150 = vmatprep.subr.mxu0 0.0
    %151 = vmatpush1.msra.mxu0 0.0
    %152 = vmatprep.subr.mxu0 0.0
    %153 = vmatpush1.msra.mxu0 0.0
    %154 = vmatprep.mubr.f32.mxu0 0.0
    %155 = vmatmul.mubr.f32.gmra.mrb[0].mxu0 %v88
    %v156 = vpop.f32.mrb[0].mxu0
    %v157 = vadd.f32 0.0, %v156
    %v158 = vpop.f32.mrb[0].mxu0
    %159 = vdwg.mxu0
    %160 = vst [vmem:[#allocation9] sm:$0xf] %v157
    // Predicated region
    $region18: #{tpu_custom_call.1} parent=1 // pred_check
      _
    $region19: #{tpu_custom_call.1} parent=1 // pred_check_branch
      %162 = sbr.rel (0) target = $region21
    $region20: #{tpu_custom_call.1} parent=1 // pred_region
      %s164 = ssub.s32 64, 64
      %165 = vsyncadd [#allocation6], %s164
      %s167 = sshll.u32 [#allocation9], 4
      %s168 = int_to_ptr.vmem [resolvable:$true] %s167
      %170 = dma.vmem_to_hbm [thread:$0]  %s168, 64, %s3, [#allocation6]
    $region21: #{tpu_custom_call.1} parent=1 // pred_fallthru
      _
    // Predicated region
    $region22: #{tpu_custom_call.1} parent=1 // pred_check
      _
    $region23: #{tpu_custom_call.1} parent=1 // pred_check_branch
      %172 = sbr.rel (0) target = $region25
    $region24: #{tpu_custom_call.1} parent=1 // pred_region
      %173 = dma.done [#allocation6], 64
    $region25: #{tpu_custom_call.1} parent=1 // pred_fallthru
      _
    %174 = vsyncpa [#allocation5], 1
    %175 = vsyncpa [#allocation8], 1
    %176 = vsyncpa [#allocation6], 1

</llo_original>
